<compile_context>
chip_gen: v6e
topology: v6e:2x2x1
jax: 0.10.0
libtpu: 0.0.40
codegen_flags: <defaults>
</compile_context>

<pallas_src>
import functools

import jax
import jax.numpy as jnp
from jax.experimental import pallas as pl
from jax.experimental.pallas import tpu as pltpu


def _label_smoothing_kernel(x_ref, tgt_ref, out_ref, acc_ref, *,
                            confidence, smoothing, n_rows, tile_rows,
                            tiles_per_shard):
    s = pl.program_id(0)   # shard axis ("parallel"; maps to TensorCores on v7x)
    t = pl.program_id(1)   # row-tile axis within shard ("arbitrary" reduction)

    @pl.when(t == 0)
    def _():
        acc_ref[...] = jnp.zeros_like(acc_ref)

    x = x_ref[...].astype(jnp.float32)          # (TM, C)
    tgt = tgt_ref[...]                          # (TM, 1) int32
    tm, c = x.shape

    # Numerically stable row-wise logsumexp.
    m = jnp.max(x, axis=-1, keepdims=True)
    lse = m + jnp.log(jnp.sum(jnp.exp(x - m), axis=-1, keepdims=True))    # (TM, 1)

    # Fused label-smoothing loss:
    #   loss = lse - sum((confidence*onehot + smoothing/C) * x, axis=-1)
    col = jax.lax.broadcasted_iota(jnp.int32, (tm, c), 1)
    w_hit = jnp.float32(confidence + smoothing / c)
    w_miss = jnp.float32(smoothing / c)
    w = jnp.where(col == tgt, w_hit, w_miss)                              # (TM, C)
    loss = lse - jnp.sum(w * x, axis=-1, keepdims=True)                   # (TM, 1)

    # Mask rows past the logical end of the batch (tail-tile padding and the
    # clamped duplicate block a shard may see when tiles don't split evenly).
    base = (s * tiles_per_shard + t) * tile_rows
    row = base + jax.lax.broadcasted_iota(jnp.int32, (tm, 1), 0)
    loss = jnp.where(row < n_rows, loss, 0.0)

    acc_ref[...] += jnp.sum(loss, axis=0, keepdims=True)

    @pl.when(t == pl.num_programs(1) - 1)
    def _():
        out_ref[...] = jnp.broadcast_to(acc_ref[...], out_ref.shape)


def label_smoothing_loss(x, target, smoothing=0.0, *, tile_rows=None,
                         num_shards=None, tile_budget_bytes=4 << 20):
    """x: (N, C) float, target: (N,) int -> scalar mean label-smoothing loss (f32)."""
    n, c = x.shape
    confidence = 1.0 - smoothing

    itemsize = jnp.dtype(x.dtype).itemsize
    row_align = max(8, 32 // itemsize)       # 8 for f32, 16 for bf16 (sublane packing)

    def _round_up(v, m):
        return ((v + m - 1) // m) * m

    if tile_rows is None:
        # Largest row tile that fits the per-buffer VMEM budget (conservative enough
        # for v7x's 64 MiB physical / 32 MiB scoped VMEM while double-buffered).
        rows_fit = (tile_budget_bytes // (c * itemsize)) // row_align * row_align
        tile_rows = int(min(max(rows_fit, row_align), 1024, _round_up(n, row_align)))
    tile_rows = max(row_align, _round_up(int(tile_rows), row_align))

    n_tiles = pl.cdiv(n, tile_rows)
    if num_shards is None:
        num_shards = 2 if n_tiles >= 2 else 1   # v7x: 2 TCs/chip; harmless on v5e/v6e
    num_shards = max(1, min(int(num_shards), n_tiles))
    tiles_per_shard = pl.cdiv(n_tiles, num_shards)

    tgt2d = target.astype(jnp.int32).reshape(n, 1)

    def row_block(si, ti):
        # Clamp so a shard's trailing (fully out-of-range) tile re-reads a valid block;
        # its contribution is zeroed by the in-kernel row mask.
        return (jnp.minimum(si * tiles_per_shard + ti, n_tiles - 1), 0)

    kernel = functools.partial(
        _label_smoothing_kernel,
        confidence=confidence, smoothing=smoothing, n_rows=n,
        tile_rows=tile_rows, tiles_per_shard=tiles_per_shard)

    # Raise the scoped VMEM limit to cover double-buffered input tiles plus f32
    # intermediates, but stay well under v7x's 64 MiB physical VMEM.
    tile_bytes = tile_rows * c * itemsize
    vmem_est = 2 * tile_bytes + 3 * tile_rows * c * 4 + (4 << 20)
    vmem_limit = int(min(max(vmem_est, 32 << 20), 56 << 20))

    out = pl.pallas_call(
        kernel,
        out_shape=jax.ShapeDtypeStruct((num_shards * 8, 128), jnp.float32),
        grid_spec=pltpu.PrefetchScalarGridSpec(
            num_scalar_prefetch=0,
            grid=(num_shards, tiles_per_shard),
            in_specs=[
                pl.BlockSpec((tile_rows, c), row_block),
                pl.BlockSpec((tile_rows, 1), row_block),
            ],
            out_specs=pl.BlockSpec((8, 128), lambda si, ti: (si, 0)),
            scratch_shapes=[pltpu.VMEM((1, 1), jnp.float32)],
        ),
        compiler_params=pltpu.CompilerParams(
            dimension_semantics=("parallel", "arbitrary"),
            vmem_limit_bytes=vmem_limit),
    )(x, tgt2d)

    partials = out.reshape(num_shards, 8, 128)[:, 0, 0]     # one partial sum per shard
    return jnp.sum(partials) / n


def _reference(x, target, smoothing):
    confidence = 1.0 - smoothing
    logprobs = jax.nn.log_softmax(x.astype(jnp.float32), axis=-1)
    nll = -jnp.take_along_axis(logprobs, target[:, None].astype(jnp.int32), axis=-1)[:, 0]
    smooth = -jnp.mean(logprobs, axis=-1)
    return jnp.mean(confidence * nll + smoothing * smooth)


if __name__ == "__main__":
    key = jax.random.PRNGKey(0)
    kx, kt, kx2, kt2 = jax.random.split(key, 4)

    # Case 1: small, exact-fit shapes (single tile / single shard).
    N, C = 16, 128
    smoothing = 0.1
    x = jax.random.normal(kx, (N, C), dtype=jnp.float32)
    target = jax.random.randint(kt, (N,), 0, C, dtype=jnp.int32)

    loss = label_smoothing_loss(x, target, smoothing=smoothing)
    loss = jax.block_until_ready(loss)
    ref = _reference(x, target, smoothing)
    assert jnp.allclose(loss, ref, atol=1e-4, rtol=1e-5), (loss, ref)

    # Case 2: N not a multiple of the tile, forced small tiles so the 2-shard
    # ("parallel") grid, the tail-row mask and the clamped duplicate block are exercised.
    N2, C2 = 50, 256
    x2 = jax.random.normal(kx2, (N2, C2), dtype=jnp.float32)
    target2 = jax.random.randint(kt2, (N2,), 0, C2, dtype=jnp.int32)

    loss2 = label_smoothing_loss(x2, target2, smoothing=0.2, tile_rows=8)
    loss2 = jax.block_until_ready(loss2)
    ref2 = _reference(x2, target2, 0.2)
    assert jnp.allclose(loss2, ref2, atol=1e-4, rtol=1e-5), (loss2, ref2)

    print("KERNEL_OK")
</pallas_src>

<mosaic_0001>
module attributes {stable_mosaic.version = 11 : i64} {
  func.func @_label_smoothing_kernel(%arg0: i32, %arg1: i32, %arg2: memref<16x128xf32, #tpu.memory_space<vmem>>, %arg3: memref<16x1xi32, #tpu.memory_space<vmem>>, %arg4: memref<8x128xf32, #tpu.memory_space<vmem>>, %arg5: memref<1x1xf32, #tpu.memory_space<vmem>>) attributes {dimension_semantics = [#tpu.dimension_semantics<parallel>, #tpu.dimension_semantics<arbitrary>], iteration_bounds = array<i64: 1, 1>, scalar_prefetch = 0 : i64, scratch_operands = 1 : i64, tpu.core_type = #tpu.core_type<tc>, window_params = [{transform_indices = @transform_0, window_bounds = array<i64: 16, 128>}, {transform_indices = @transform_1, window_bounds = array<i64: 16, 1>}, {transform_indices = @transform_2, window_bounds = array<i64: 8, 128>}]} {
    %c0_i32 = arith.constant 0 : i32
    %0 = arith.cmpi eq, %arg1, %c0_i32 : i32
    %1 = arith.extui %0 : i1 to i32
    %c0_i32_0 = arith.constant 0 : i32
    %2 = arith.cmpi ne, %1, %c0_i32_0 : i32
    scf.if %2 {
      %cst_17 = arith.constant 0.000000e+00 : f32
      %42 = vector.broadcast %cst_17 : f32 to vector<1x1xf32>
      %c0_18 = arith.constant 0 : index
      %c0_19 = arith.constant 0 : index
      %43 = vector.load %arg5[%c0_18, %c0_19] : memref<1x1xf32, #tpu.memory_space<vmem>>, vector<1x1xf32>
      tpu.vector_store %arg5[%c0_18, %c0_19], %42 {strides = array<i32>} : memref<1x1xf32, #tpu.memory_space<vmem>>, vector<1x1xf32>,
    } else {
    }
    %c0 = arith.constant 0 : index
    %c0_1 = arith.constant 0 : index
    %3 = vector.load %arg2[%c0, %c0_1] : memref<16x128xf32, #tpu.memory_space<vmem>>, vector<16x128xf32>
    %c0_2 = arith.constant 0 : index
    %c0_3 = arith.constant 0 : index
    %4 = vector.load %arg3[%c0_2, %c0_3] : memref<16x1xi32, #tpu.memory_space<vmem>>, vector<16x1xi32>
    %cst = arith.constant dense<0xFF800000> : vector<16xf32>
    %5 = vector.multi_reduction <maximumf>, %3, %cst [1] : vector<16x128xf32> to vector<16xf32>
    %6 = vector.shape_cast %5 : vector<16xf32> to vector<16x1xf32>
    %7 = vector.broadcast %6 : vector<16x1xf32> to vector<16x128xf32>
    %8 = arith.subf %3, %7 : vector<16x128xf32>
    %9 = math.exp %8 : vector<16x128xf32>
    %cst_4 = arith.constant dense<0.000000e+00> : vector<16xf32>
    %10 = vector.multi_reduction <add>, %9, %cst_4 [1] : vector<16x128xf32> to vector<16xf32>
    %11 = vector.shape_cast %10 : vector<16xf32> to vector<16x1xf32>
    %12 = math.log %11 : vector<16x1xf32>
    %13 = arith.addf %6, %12 : vector<16x1xf32>
    %14 = tpu.iota {dimensions = array<i32: 1>} : vector<16x128xi32>
    %15 = vector.broadcast %4 : vector<16x1xi32> to vector<16x128xi32>
    %16 = arith.cmpi eq, %14, %15 : vector<16x128xi32>
    %cst_5 = arith.constant 0.900781273 : f32
    %cst_6 = arith.constant 7.812500e-04 : f32
    %17 = vector.broadcast %cst_5 : f32 to vector<16x128xf32>
    %18 = vector.broadcast %cst_6 : f32 to vector<16x128xf32>
    %19 = arith.select %16, %17, %18 : vector<16x128xi1>, vector<16x128xf32>
    %20 = arith.mulf %19, %3 : vector<16x128xf32>
    %cst_7 = arith.constant dense<0.000000e+00> : vector<16xf32>
    %21 = vector.multi_reduction <add>, %20, %cst_7 [1] : vector<16x128xf32> to vector<16xf32>
    %22 = vector.shape_cast %21 : vector<16xf32> to vector<16x1xf32>
    %23 = arith.subf %13, %22 : vector<16x1xf32>
    %c1_i32 = arith.constant 1 : i32
    %24 = arith.muli %arg0, %c1_i32 : i32
    %25 = arith.addi %24, %arg1 : i32
    %c16_i32 = arith.constant 16 : i32
    %26 = arith.muli %25, %c16_i32 : i32
    %27 = tpu.iota {dimensions = array<i32: 0>} : vector<16x1xi32>
    %28 = vector.broadcast %26 : i32 to vector<16x1xi32>
    %29 = arith.addi %28, %27 : vector<16x1xi32>
    %c16_i32_8 = arith.constant 16 : i32
    %30 = vector.broadcast %c16_i32_8 : i32 to vector<16x1xi32>
    %31 = arith.cmpi slt, %29, %30 : vector<16x1xi32>
    %cst_9 = arith.constant 0.000000e+00 : f32
    %32 = vector.broadcast %cst_9 : f32 to vector<16x1xf32>
    %33 = arith.select %31, %23, %32 : vector<16x1xi1>, vector<16x1xf32>
    %c0_10 = arith.constant 0 : index
    %c0_11 = arith.constant 0 : index
    %34 = vector.load %arg5[%c0_10, %c0_11] : memref<1x1xf32, #tpu.memory_space<vmem>>, vector<1x1xf32>
    %cst_12 = arith.constant dense<0.000000e+00> : vector<1xf32>
    %35 = vector.multi_reduction <add>, %33, %cst_12 [0] : vector<16x1xf32> to vector<1xf32>
    %36 = vector.shape_cast %35 : vector<1xf32> to vector<1x1xf32>
    %37 = arith.addf %34, %36 : vector<1x1xf32>
    %c0_13 = arith.constant 0 : index
    %c0_14 = arith.constant 0 : index
    %38 = vector.load %arg5[%c0_13, %c0_14] : memref<1x1xf32, #tpu.memory_space<vmem>>, vector<1x1xf32>
    tpu.vector_store %arg5[%c0_13, %c0_14], %37 {strides = array<i32>} : memref<1x1xf32, #tpu.memory_space<vmem>>, vector<1x1xf32>,
    %c0_i32_15 = arith.constant 0 : i32
    %39 = arith.cmpi eq, %arg1, %c0_i32_15 : i32
    %40 = arith.extui %39 : i1 to i32
    %c0_i32_16 = arith.constant 0 : i32
    %41 = arith.cmpi ne, %40, %c0_i32_16 : i32
    scf.if %41 {
      %c0_17 = arith.constant 0 : index
      %c0_18 = arith.constant 0 : index
      %42 = vector.load %arg5[%c0_17, %c0_18] : memref<1x1xf32, #tpu.memory_space<vmem>>, vector<1x1xf32>
      %43 = vector.shape_cast %42 : vector<1x1xf32> to vector<1x1xf32>
      %44 = vector.broadcast %43 : vector<1x1xf32> to vector<8x128xf32>
      %c0_19 = arith.constant 0 : index
      %c0_20 = arith.constant 0 : index
      %45 = vector.load %arg4[%c0_19, %c0_20] : memref<8x128xf32, #tpu.memory_space<vmem>>, vector<8x128xf32>
      tpu.vector_store %arg4[%c0_19, %c0_20], %44 {strides = array<i32>} : memref<8x128xf32, #tpu.memory_space<vmem>>, vector<8x128xf32>,
    } else {
    }
    return
  }
  func.func @transform_0(%arg0: i32, %arg1: i32) -> (i32, i32) {
    %c1_i32 = arith.constant 1 : i32
    %0 = arith.muli %arg0, %c1_i32 : i32
    %1 = arith.addi %0, %arg1 : i32
    %c0_i32 = arith.constant 0 : i32
    %2 = arith.minsi %1, %c0_i32 : i32
    %c0_i32_0 = arith.constant 0 : i32
    %c0_i32_1 = arith.constant 0 : i32
    return %2, %c0_i32_0 : i32, i32
  }
  func.func @transform_1(%arg0: i32, %arg1: i32) -> (i32, i32) {
    %c1_i32 = arith.constant 1 : i32
    %0 = arith.muli %arg0, %c1_i32 : i32
    %1 = arith.addi %0, %arg1 : i32
    %c0_i32 = arith.constant 0 : i32
    %2 = arith.minsi %1, %c0_i32 : i32
    %c0_i32_0 = arith.constant 0 : i32
    %c0_i32_1 = arith.constant 0 : i32
    return %2, %c0_i32_0 : i32, i32
  }
  func.func @transform_2(%arg0: i32, %arg1: i32) -> (i32, i32) {
    %c0_i32 = arith.constant 0 : i32
    %c0_i32_0 = arith.constant 0 : i32
    return %arg0, %c0_i32 : i32, i32
  }
}

</mosaic_0001>

<llo_original>
// kernel: tpu_custom_call.1
$region0: #{tpu_custom_call.1}
  #allocation0 [shape = 'u32[]', space=smem, size = 0x4, offset = 0x4, fixed_abs, tag = 'smem constant byte address 0x4 - core index']
  #allocation1 [shape = 'u32[144,128]{1,0:T(1,128)}', space=vmem, size = 0x12000, scoped, tag = 'internal scratch']
  #allocation2 [shape = 'f32[1,1]{1,0:T(1,128)}', space=vmem, size = 0x200, scoped, tag = 'scratch operand']
  %s0 = inlined_call_operand.vmem [shape: f32[16,128], index: 0, kind: input, shape index: {}]
  %s1 = inlined_call_operand.vmem [shape: s32[16,1], index: 1, kind: input, shape index: {}]
  %s2 = inlined_call_operand.hbm [shape: f32[8,128], index: 2, kind: output, shape index: {}]
  %s3 = sld [smem:[#allocation0]]
  $region26: #{tpu_custom_call.1} parent=0
    _
  %s5 = ssub.s32 1, %s3
  %s6 = scalar_select 0, %s5, %s3
  $region1: #{tpu_custom_call.1} parent=0
    #allocation3 [shape = 'u8[4096]{0}', space=vmem, size = 0x1000, scoped, tag = 'output window, operand 0, single buffered']
    #allocation4 [shape = 's32[1]{0}', space=sflag, size = 0x4, scoped, tag = 'scoped memory for tpu_custom_call.1']
    %7 = vsyncpa [#allocation4], 0
    // Predicated region
    $region2: #{tpu_custom_call.1} parent=1 // pred_check
      _
    $region3: #{tpu_custom_call.1} parent=1 // pred_check_branch
      %9 = sbr.rel (0) target = $region5
    $region4: #{tpu_custom_call.1} parent=1 // pred_region
      %s10 = sadd.s32 0, 0
      %p11 = scmp.lt.s32.totalorder %s10, 0
      %s12 = scalar_select %p11, %s10, 0
      %s13 = smul.u32 2, %s12
      %p14 = scmp.lt.s32.totalorder %s13, 1
      %s15 = scalar_select %p14, %s13, 1
      %s16 = smul.addr %s15, 8
      %s17 = scalar_lea.vmem %s0, %s16
      %s18 = sadd.s32 0, 0
      %p19 = scmp.lt.s32.totalorder %s18, 0
      %s20 = scalar_select %p19, %s18, 0
      %s21 = smul.u32 2, %s20
    $region5: #{tpu_custom_call.1} parent=1 // pred_fallthru
      _
    // Predicated region
    $region6: #{tpu_custom_call.1} parent=1 // pred_check
      _
    $region7: #{tpu_custom_call.1} parent=1 // pred_check_branch
      %23 = sbr.rel (0) target = $region9
    $region8: #{tpu_custom_call.1} parent=1 // pred_region
      %s24 = sadd.s32 0, 0
      %p25 = scmp.lt.s32.totalorder %s24, 0
      %s26 = scalar_select %p25, %s24, 0
      %s27 = smul.u32 2, %s26
      %p28 = scmp.lt.s32.totalorder %s27, 1
      %s29 = scalar_select %p28, %s27, 1
      %s30 = smul.addr %s29, 8
      %s31 = scalar_lea.vmem %s1, %s30
      %s32 = sadd.s32 0, 0
      %p33 = scmp.lt.s32.totalorder %s32, 0
      %s34 = scalar_select %p33, %s32, 0
      %s35 = smul.u32 2, %s34
    $region9: #{tpu_custom_call.1} parent=1 // pred_fallthru
      _
    %s36 = sadd.s32 0, 0
    %p37 = scmp.lt.s32.totalorder %s36, 0
    %s38 = scalar_select %p37, %s36, 0
    %s39 = smul.u32 2, %s38
    %p40 = scmp.lt.s32.totalorder %s39, 1
    %s41 = scalar_select %p40, %s39, 1
    %s42 = smul.addr %s41, 8
    %s43 = scalar_lea.vmem %s0, %s42
    %s44 = sadd.s32 0, 0
    %p45 = scmp.lt.s32.totalorder %s44, 0
    %s46 = scalar_select %p45, %s44, 0
    %s47 = smul.u32 2, %s46
    %p48 = scmp.lt.s32.totalorder %s47, 1
    %s49 = scalar_select %p48, %s47, 1
    %s50 = smul.addr %s49, 8
    %s51 = scalar_lea.vmem %s1, %s50
    %s52 = sadd.s32 0, 0
    %p53 = scmp.lt.s32.totalorder %s52, 0
    %s54 = scalar_select %p53, %s52, 0
    %s55 = smul.u32 2, %s54
    %p56 = scmp.lt.s32.totalorder %s55, 1
    %s57 = scalar_select %p56, %s55, 1
    %s58 = smul.addr %s57, 8
    %s59 = scalar_lea.vmem %s0, %s58
    %s60 = sadd.s32 0, 0
    %p61 = scmp.lt.s32.totalorder %s60, 0
    %s62 = scalar_select %p61, %s60, 0
    %s63 = smul.u32 2, %s62
    %s64 = sadd.s32 0, 0
    %p65 = scmp.lt.s32.totalorder %s64, 0
    %s66 = scalar_select %p65, %s64, 0
    %s67 = smul.u32 2, %s66
    %p68 = scmp.lt.s32.totalorder %s67, 1
    %s69 = scalar_select %p68, %s67, 1
    %s70 = smul.addr %s69, 8
    %s71 = scalar_lea.vmem %s1, %s70
    %s72 = sadd.s32 0, 0
    %p73 = scmp.lt.s32.totalorder %s72, 0
    %s74 = scalar_select %p73, %s72, 0
    %s75 = smul.u32 2, %s74
    %p76 = scmp.eq.s32.totalorder 0, 0
    // Predicated region
    $region10: #{tpu_custom_call.1} parent=1 // pred_check
      %p77 = pneg %p76
    $region11: #{tpu_custom_call.1} parent=1 // pred_check_branch
      %79 = sbr.rel (%p77) target = $region13
    $region12: #{tpu_custom_call.1} parent=1 // pred_region
      %vm80 = vcmask 0
      %81 = vst.msk [vmem:[#allocation2] sm:$0x1] %vm80, 0.0
    $region13: #{tpu_custom_call.1} parent=1 // pred_fallthru
      _
    %v82 = vld [vmem:[%s59] sm:$0xff]
    %v83 = vld [vmem:[%s59 + $0x8] sm:$0xff]
    %v84 = vld [vmem:[%s71] sm:$0xff]
    %v85 = vld [vmem:[%s71 + $0x8] sm:$0xff]
    %86 = vmax.xlane.f32.xlu0 %v82
    %v87 = vpop.xlane.xlu0 %86
    %88 = vmax.xlane.f32.xlu0 %v83
    %v89 = vpop.xlane.xlu0 %88
    %v90 = vsub.f32 %v82, %v87
    %v91 = vsub.f32 %v83, %v89
    %v92 = vmul.f32 %v90, 1.442695
    %v93 = vpow.pop %v92
    %v94 = vmul.f32 %v91, 1.442695
    %v95 = vpow.pop %v94
    %96 = vadd.xlane.f32.xlu0 %v93
    %v97 = vpop.xlane.xlu0 %96
    %98 = vadd.xlane.f32.xlu0 %v95
    %v99 = vpop.xlane.xlu0 %98
    %v100 = vlog2.pop %v97
    %v101 = vmul.f32 %v100, 0.6931472
    %v102 = vlog2.pop %v99
    %v103 = vmul.f32 %v102, 0.6931472
    %v104 = vadd.f32 %v87, %v101
    %v105 = vadd.f32 %v89, %v103
    %v106 = vlaneseq
    %v107 = vand.u32 %v106, 127
    %108 = vset.pattern.permute.xlu0 0
    %109 = vperm.xlu0 %108, %v84
    %v110 = vpop.permute.xlu0 %109
    %111 = vset.pattern.permute.xlu0 0
    %112 = vperm.xlu0 %111, %v85
    %v113 = vpop.permute.xlu0 %112
    %vm114 = vcmp.eq.s32.totalorder %v107, %v110
    %vm115 = vcmp.eq.s32.totalorder %v107, %v113
    %v116 = vsel %vm114, 0.9007813, 0.00078125
    %v117 = vsel %vm115, 0.9007813, 0.00078125
    %v118 = vmul.f32 %v116, %v82
    %v119 = vmul.f32 %v117, %v83
    %120 = vadd.xlane.f32.xlu0 %v118
    %v121 = vpop.xlane.xlu0 %120
    %122 = vadd.xlane.f32.xlu0 %v119
    %v123 = vpop.xlane.xlu0 %122
    %v124 = vsub.f32 %v104, %v121
    %v125 = vsub.f32 %v105, %v123
    %s126 = sadd.s32 0, 0
    %s127 = smul.u32 %s126, 16
    %v128 = vlaneseq
    %v129 = vshrl.u32 %v128, 7
    %v130 = vadd.s32 %v129, 8
    %v131 = vstv %s127
    %v132 = vadd.s32 %v131, %v129
    %v133 = vadd.s32 %v131, %v130
    %vm134 = vcmp.lt.s32.totalorder %v132, 16
    %vm135 = vcmp.lt.s32.totalorder %v133, 16
    %v136 = vsel %vm134, %v124, 0.0
    %v137 = vsel %vm135, %v125, 0.0
    %v138 = vld [vmem:[#allocation2] sm:$0x1]
    %v139 = vadd.f32 %v136, %v137
    %v140 = vrot.slane %v139, 4
    %v141 = vadd.f32 %v139, %v140
    %v142 = vrot.slane %v141, 2
    %v143 = vadd.f32 %v141, %v142
    %v144 = vrot.slane %v143, 1
    %v145 = vadd.f32 %v143, %v144
    %v146 = vadd.f32 %v138, %v145
    %vm147 = vcmask 0
    %148 = vst.msk [vmem:[#allocation2] sm:$0x1] %vm147, %v146
    // Predicated region
    $region14: #{tpu_custom_call.1} parent=1 // pred_check
      %p149 = pneg %p76
    $region15: #{tpu_custom_call.1} parent=1 // pred_check_branch
      %151 = sbr.rel (%p149) target = $region17
    $region16: #{tpu_custom_call.1} parent=1 // pred_region
      %v152 = vld [vmem:[#allocation2] sm:$0x1]
      %v154 = vlaneseq
      %v155 = vshrl.u32 %v154, 7
      %v156 = vsub.s32 0, %v155
      %v157 = vrot.slane %v152, %v156
      %158 = vset.pattern.permute.xlu0 0
      %159 = vperm.xlu0 %158, %v157
      %v160 = vpop.permute.xlu0 %159
      %162 = vst [vmem:[#allocation3] sm:$0xff] %v160
    $region17: #{tpu_custom_call.1} parent=1 // pred_fallthru
      _
    // Predicated region
    $region18: #{tpu_custom_call.1} parent=1 // pred_check
      _
    $region19: #{tpu_custom_call.1} parent=1 // pred_check_branch
      %164 = sbr.rel (0) target = $region21
    $region20: #{tpu_custom_call.1} parent=1 // pred_region
      %s166 = ssub.s32 128, 128
      %167 = vsyncadd [#allocation4], %s166
      %s169 = sshll.u32 [#allocation3], 4
      %s170 = int_to_ptr.vmem [resolvable:$true] %s169
      %172 = dma.vmem_to_hbm [thread:$0]  %s170, 128, %s2, [#allocation4]
    $region21: #{tpu_custom_call.1} parent=1 // pred_fallthru
      _
    // Predicated region
    $region22: #{tpu_custom_call.1} parent=1 // pred_check
      _
    $region23: #{tpu_custom_call.1} parent=1 // pred_check_branch
      %174 = sbr.rel (0) target = $region25
    $region24: #{tpu_custom_call.1} parent=1 // pred_region
      %175 = dma.done [#allocation4], 128
    $region25: #{tpu_custom_call.1} parent=1 // pred_fallthru
      _
    %176 = vsyncpa [#allocation4], 1

</llo_original>
